<compile_context>
chip_gen: v7x
topology: tpu7x:2x2x1
jax: 0.10.0
libtpu: 0.0.40
codegen_flags: <defaults>
</compile_context>

<pallas_src>
import functools

import jax
import jax.numpy as jnp
from jax import lax
from jax.experimental import pallas as pl
from jax.experimental.pallas import tpu as pltpu


def _pick_token_tile(S, target=512):
    """Largest divisor of S that is <= target and a multiple of 8 (or S itself)."""
    for t in range(min(S, target), 0, -1):
        if S % t == 0 and (t % 8 == 0 or t == S):
            return t
    return S


def _embedding_kernel(ids_ref,      # scalar prefetch: flat token ids, SMEM (B*S,)
                      word_hbm,     # word embedding table, raw HBM ref (V, H)
                      tt_ref,       # token-type ids for this tile, VMEM (TS, 1)
                      pos_ref,      # position rows for this tile, VMEM (TS, H)
                      type_ref,     # whole token-type table, VMEM (Vt, H)
                      gb_ref,       # stacked layernorm gamma/beta, VMEM (2, H)
                      o_ref,        # output tile (TS, H)
                      wbuf,         # VMEM scratch (2, TS, H): gathered word rows
                      sem,          # DMA semaphores, one per buffer slot
                      *, TS, S, B, n_seq_tiles, n_types, eps):
    j = pl.program_id(0)            # sequence-tile index (outer)
    b = pl.program_id(1)            # batch index (inner)
    step = j * B + b
    n_steps = n_seq_tiles * B
    slot = step % 2

    def issue_gather(base, s):
        # Issue TS independent row DMAs word_hbm[row] -> wbuf[s, r].  They all
        # signal the same per-slot DMA semaphore and each copies H elements.
        def body(r, carry):
            row = ids_ref[base + r]
            pltpu.make_async_copy(word_hbm.at[pl.ds(row, 1), :],
                                  wbuf.at[s, pl.ds(r, 1), :],
                                  sem.at[s]).start()
            return carry
        lax.fori_loop(0, TS, body, 0, unroll=min(TS, 8))

    # Prime the pipeline: the very first step has nothing in flight yet.
    @pl.when(step == 0)
    def _():
        issue_gather(b * S + j * TS, slot)

    # Prefetch the NEXT step's word rows into the other slot (ids are already
    # fully resident in SMEM).  Scalar id reads happen before the wait below.
    @pl.when(step + 1 < n_steps)
    def _():
        nb = b + 1
        wrap = nb == B
        nj = jnp.where(wrap, j + 1, j)
        nb = jnp.where(wrap, 0, nb)
        issue_gather(nb * S + nj * TS, 1 - slot)

    # Single wait covering the whole gathered slab: every row copy incremented
    # sem[slot] by H*itemsize bytes, so one wait of TS*H*itemsize is equivalent
    # to TS per-row waits (and much cheaper).
    pltpu.make_async_copy(word_hbm.at[pl.ds(0, TS), :],
                          wbuf.at[slot],
                          sem.at[slot]).wait()

    we = wbuf[slot].astype(jnp.float32)          # (TS, H)
    pe = pos_ref[...].astype(jnp.float32)        # (TS, H)

    # Token-type embedding: tiny table resident in VMEM, resolved on the VPU.
    tt = tt_ref[...]                             # (TS, 1) int32
    trows = type_ref[...].astype(jnp.float32)    # (Vt, H)
    if n_types == 2:
        t0 = trows[0:1, :]
        te = t0 + tt.astype(jnp.float32) * (trows[1:2, :] - t0)
    else:
        te = jnp.zeros_like(we)
        for v in range(n_types):
            te = jnp.where(tt == v, trows[v:v + 1, :], te)

    x = we + pe + te

    # BertLayerNorm: biased variance over the hidden dim, eps inside rsqrt.
    mean = jnp.mean(x, axis=-1, keepdims=True)
    var = jnp.mean((x - mean) ** 2, axis=-1, keepdims=True)
    y = (x - mean) * lax.rsqrt(var + eps)

    gamma = gb_ref[0:1, :].astype(jnp.float32)
    beta = gb_ref[1:2, :].astype(jnp.float32)
    # TODO(synk): nn.Dropout is identity in eval mode; train-mode dropout
    # (pltpu.prng_random_bits mask) is intentionally not applied here.
    o_ref[...] = (y * gamma + beta).astype(o_ref.dtype)


def bert_embedding(input_ids, token_type_ids, word_table, pos_table,
                   type_table, gamma, beta, *, eps=1e-12,
                   out_dtype=jnp.float32):
    B, S = input_ids.shape
    V, H = word_table.shape
    n_types = type_table.shape[0]

    if token_type_ids is None:                      # matches the torch module
        token_type_ids = jnp.zeros_like(input_ids)

    TS = _pick_token_tile(S)                        # tokens per grid step
    n_seq_tiles = S // TS

    # Clamp ids so a bad id can never become an out-of-bounds HBM DMA.
    ids_flat = jnp.clip(input_ids.reshape(-1).astype(jnp.int32), 0, V - 1)
    tts_col = token_type_ids.reshape(-1, 1).astype(jnp.int32)
    pos_used = pos_table[:S]                        # only the first S rows read
    gb = jnp.stack([gamma.reshape(H), beta.reshape(H)], axis=0)

    kernel = functools.partial(_embedding_kernel, TS=TS, S=S, B=B,
                               n_seq_tiles=n_seq_tiles, n_types=n_types,
                               eps=eps)

    # VMEM budget: double-buffered pos / tt / out blocks, the double-buffered
    # word-gather scratch, and the small resident tables, with 2x headroom.
    isz = lambda a: jnp.dtype(a).itemsize
    est = (2 * TS * H * isz(pos_used.dtype)         # pos block (2 buffers)
           + 2 * TS * 4                             # tt ids block
           + 2 * TS * H * isz(jnp.dtype(out_dtype)) # output block
           + 2 * TS * H * isz(word_table.dtype)     # wbuf scratch (2 slots)
           + 2 * n_types * H * isz(type_table.dtype)
           + 4 * H * isz(gb.dtype))
    vmem_limit = int(min(64 * 1024 * 1024, max(32 * 1024 * 1024, 2 * est)))

    out_flat = pl.pallas_call(
        kernel,
        out_shape=jax.ShapeDtypeStruct((B * S, H), out_dtype),
        grid_spec=pltpu.PrefetchScalarGridSpec(
            num_scalar_prefetch=1,                  # flat token ids -> SMEM
            grid=(n_seq_tiles, B),                  # batch innermost: pos reused
            in_specs=[
                # Word table stays in HBM; rows gathered with in-kernel DMAs.
                pl.BlockSpec(memory_space=pl.ANY),
                # Per-tile token-type ids as a (TS, 1) column.
                pl.BlockSpec((TS, 1),
                             lambda j, b, ids: (b * n_seq_tiles + j, 0)),
                # Position rows for this tile; index constant across batch axis
                # so the slab is NOT re-DMA'd between consecutive steps.
                pl.BlockSpec((TS, H), lambda j, b, ids: (j, 0)),
                # Whole (tiny) token-type table resident in VMEM.
                pl.BlockSpec((n_types, H), lambda j, b, ids: (0, 0)),
                # Stacked layernorm gamma/beta, resident.
                pl.BlockSpec((2, H), lambda j, b, ids: (0, 0)),
            ],
            out_specs=pl.BlockSpec(
                (TS, H), lambda j, b, ids: (b * n_seq_tiles + j, 0)),
            scratch_shapes=[
                pltpu.VMEM((2, TS, H), word_table.dtype),  # double-buffered rows
                pltpu.SemaphoreType.DMA((2,)),             # one sem per slot
            ],
        ),
        compiler_params=pltpu.CompilerParams(
            # The cross-step word-row prefetch carries state across both grid
            # axes, so both must stay sequential ("arbitrary").
            dimension_semantics=("arbitrary", "arbitrary"),
            vmem_limit_bytes=vmem_limit),
    )(ids_flat, word_table, tts_col, pos_used, type_table, gb)

    return out_flat.reshape(B, S, H)


def _reference(input_ids, token_type_ids, word_table, pos_table, type_table,
               gamma, beta, eps=1e-12):
    B, S = input_ids.shape
    we = word_table[input_ids]
    te = type_table[token_type_ids]
    pe = pos_table[jnp.arange(S)][None, :, :]
    x = we + pe + te
    mean = x.mean(-1, keepdims=True)
    var = ((x - mean) ** 2).mean(-1, keepdims=True)
    y = (x - mean) / jnp.sqrt(var + eps)
    return y * gamma + beta


if __name__ == "__main__":
    # Small synthetic BERT config.
    vocab_size = 64
    hidden_size = 128
    max_position_embeddings = 32
    type_vocab_size = 2
    batch, seq = 2, 8

    key = jax.random.PRNGKey(0)
    k_w, k_p, k_t, k_ids, k_tt = jax.random.split(key, 5)

    word_table = 0.02 * jax.random.normal(k_w, (vocab_size, hidden_size),
                                          jnp.float32)
    word_table = word_table.at[0].set(0.0)          # padding_idx=0 -> zero row
    pos_table = 0.02 * jax.random.normal(k_p, (max_position_embeddings,
                                               hidden_size), jnp.float32)
    type_table = 0.02 * jax.random.normal(k_t, (type_vocab_size, hidden_size),
                                          jnp.float32)
    gamma = jnp.ones((hidden_size,), jnp.float32)   # BertLayerNorm init
    beta = jnp.zeros((hidden_size,), jnp.float32)

    input_ids = jax.random.randint(k_ids, (batch, seq), 0, vocab_size,
                                   dtype=jnp.int32)
    input_ids = input_ids.at[:, -1].set(0)          # exercise padding_idx row
    token_type_ids = jax.random.randint(k_tt, (batch, seq), 0,
                                        type_vocab_size, dtype=jnp.int32)

    out = bert_embedding(input_ids, token_type_ids, word_table, pos_table,
                         type_table, gamma, beta)
    out = jax.block_until_ready(out)

    ref = _reference(input_ids, token_type_ids, word_table, pos_table,
                     type_table, gamma, beta)
    assert out.shape == (batch, seq, hidden_size)
    assert jnp.allclose(out, ref, atol=1e-5, rtol=1e-5), "mismatch vs reference"

    print("KERNEL_OK")
</pallas_src>

<mosaic_0001>
module attributes {stable_mosaic.version = 11 : i64} {
  func.func @_embedding_kernel(%arg0: i32, %arg1: i32, %arg2: memref<16xi32, #tpu.memory_space<smem>>, %arg3: memref<64x128xf32, #tpu.memory_space<any>>, %arg4: memref<8x1xi32, #tpu.memory_space<vmem>>, %arg5: memref<8x128xf32, #tpu.memory_space<vmem>>, %arg6: memref<2x128xf32, #tpu.memory_space<vmem>>, %arg7: memref<2x128xf32, #tpu.memory_space<vmem>>, %arg8: memref<8x128xf32, #tpu.memory_space<vmem>>, %arg9: memref<2x8x128xf32, #tpu.memory_space<vmem>>, %arg10: memref<2x!tpu.dma_semaphore, #tpu.memory_space<semaphore_mem>>) attributes {dimension_semantics = [#tpu.dimension_semantics<arbitrary>, #tpu.dimension_semantics<arbitrary>], iteration_bounds = array<i64: 1, 2>, scalar_prefetch = 1 : i64, scratch_operands = 2 : i64, tpu.core_type = #tpu.core_type<tc>, window_params = [{}, {transform_indices = @transform_1, window_bounds = array<i64: 8, 1>}, {transform_indices = @transform_2, window_bounds = array<i64: 8, 128>}, {pipeline_mode = #tpu.pipeline_mode<synchronous>, transform_indices = @transform_3, window_bounds = array<i64: 2, 128>}, {pipeline_mode = #tpu.pipeline_mode<synchronous>, transform_indices = @transform_4, window_bounds = array<i64: 2, 128>}, {transform_indices = @transform_5, window_bounds = array<i64: 8, 128>}]} {
    %c2_i32 = arith.constant 2 : i32
    %0 = arith.muli %arg0, %c2_i32 : i32
    %1 = arith.addi %0, %arg1 : i32
    %c2_i32_0 = arith.constant 2 : i32
    %c0_i32 = arith.constant 0 : i32
    %2 = arith.cmpi eq, %c2_i32_0, %c0_i32 : i32
    %c1_i32 = arith.constant 1 : i32
    %3 = arith.select %2, %c1_i32, %c2_i32_0 : i32
    %4 = arith.remsi %1, %3 : i32
    %c0_i32_1 = arith.constant 0 : i32
    %5 = arith.cmpi ne, %4, %c0_i32_1 : i32
    %c0_i32_2 = arith.constant 0 : i32
    %6 = arith.cmpi slt, %4, %c0_i32_2 : i32
    %c0_i32_3 = arith.constant 0 : i32
    %7 = arith.cmpi slt, %3, %c0_i32_3 : i32
    %8 = arith.xori %6, %7 : i1
    %9 = arith.andi %8, %5 : i1
    %10 = arith.addi %4, %3 : i32
    %11 = arith.select %9, %10, %4 : i32
    %c0_i32_4 = arith.constant 0 : i32
    %12 = arith.cmpi eq, %1, %c0_i32_4 : i32
    %13 = arith.extui %12 : i1 to i32
    %c0_i32_5 = arith.constant 0 : i32
    %14 = arith.cmpi ne, %13, %c0_i32_5 : i32
    scf.if %14 {
      %c8_i32 = arith.constant 8 : i32
      %66 = arith.muli %arg1, %c8_i32 : i32
      %c8_i32_29 = arith.constant 8 : i32
      %67 = arith.muli %arg0, %c8_i32_29 : i32
      %68 = arith.addi %66, %67 : i32
      %c0_i32_30 = arith.constant 0 : i32
      %69 = arith.addi %68, %c0_i32_30 : i32
      %70 = arith.index_cast %69 : i32 to index
      %71 = memref.load %arg2[%70] : memref<16xi32, #tpu.memory_space<smem>>
      %c0_i32_31 = arith.constant 0 : i32
      %72 = tpu.memref_slice %arg3[%71, %c0_i32_31] : memref<64x128xf32, #tpu.memory_space<any>> -> memref<1x128xf32, #tpu.memory_space<any>>
      %c0_i32_32 = arith.constant 0 : i32
      %73 = tpu.memref_slice %arg9[%11, %c0_i32_30, %c0_i32_32] : memref<2x8x128xf32, #tpu.memory_space<vmem>> -> memref<1x1x128xf32, #tpu.memory_space<vmem>>
      %74 = tpu.memref_squeeze %73 : memref<1x1x128xf32, #tpu.memory_space<vmem>> -> memref<1x128xf32, #tpu.memory_space<vmem>>
      %75 = tpu.memref_slice %arg10[%11] : memref<2x!tpu.dma_semaphore, #tpu.memory_space<semaphore_mem>> -> memref<1x!tpu.dma_semaphore, #tpu.memory_space<semaphore_mem>>
      %76 = tpu.memref_squeeze %75 : memref<1x!tpu.dma_semaphore, #tpu.memory_space<semaphore_mem>> -> memref<!tpu.dma_semaphore, #tpu.memory_space<semaphore_mem>>
      tpu.enqueue_dma source(%72 : memref<1x128xf32, #tpu.memory_space<any>>) target(%74 : memref<1x128xf32, #tpu.memory_space<vmem>>) target_semaphore(%76 : memref<!tpu.dma_semaphore, #tpu.memory_space<semaphore_mem>>)
      %c1_i32_33 = arith.constant 1 : i32
      %77 = arith.addi %68, %c1_i32_33 : i32
      %78 = arith.index_cast %77 : i32 to index
      %79 = memref.load %arg2[%78] : memref<16xi32, #tpu.memory_space<smem>>
      %c0_i32_34 = arith.constant 0 : i32
      %80 = tpu.memref_slice %arg3[%79, %c0_i32_34] : memref<64x128xf32, #tpu.memory_space<any>> -> memref<1x128xf32, #tpu.memory_space<any>>
      %c0_i32_35 = arith.constant 0 : i32
      %81 = tpu.memref_slice %arg9[%11, %c1_i32_33, %c0_i32_35] : memref<2x8x128xf32, #tpu.memory_space<vmem>> -> memref<1x1x128xf32, #tpu.memory_space<vmem>>
      %82 = tpu.memref_squeeze %81 : memref<1x1x128xf32, #tpu.memory_space<vmem>> -> memref<1x128xf32, #tpu.memory_space<vmem>>
      %83 = tpu.memref_slice %arg10[%11] : memref<2x!tpu.dma_semaphore, #tpu.memory_space<semaphore_mem>> -> memref<1x!tpu.dma_semaphore, #tpu.memory_space<semaphore_mem>>
      %84 = tpu.memref_squeeze %83 : memref<1x!tpu.dma_semaphore, #tpu.memory_space<semaphore_mem>> -> memref<!tpu.dma_semaphore, #tpu.memory_space<semaphore_mem>>
      tpu.enqueue_dma source(%80 : memref<1x128xf32, #tpu.memory_space<any>>) target(%82 : memref<1x128xf32, #tpu.memory_space<vmem>>) target_semaphore(%84 : memref<!tpu.dma_semaphore, #tpu.memory_space<semaphore_mem>>)
      %c2_i32_36 = arith.constant 2 : i32
      %85 = arith.addi %68, %c2_i32_36 : i32
      %86 = arith.index_cast %85 : i32 to index
      %87 = memref.load %arg2[%86] : memref<16xi32, #tpu.memory_space<smem>>
      %c0_i32_37 = arith.constant 0 : i32
      %88 = tpu.memref_slice %arg3[%87, %c0_i32_37] : memref<64x128xf32, #tpu.memory_space<any>> -> memref<1x128xf32, #tpu.memory_space<any>>
      %c0_i32_38 = arith.constant 0 : i32
      %89 = tpu.memref_slice %arg9[%11, %c2_i32_36, %c0_i32_38] : memref<2x8x128xf32, #tpu.memory_space<vmem>> -> memref<1x1x128xf32, #tpu.memory_space<vmem>>
      %90 = tpu.memref_squeeze %89 : memref<1x1x128xf32, #tpu.memory_space<vmem>> -> memref<1x128xf32, #tpu.memory_space<vmem>>
      %91 = tpu.memref_slice %arg10[%11] : memref<2x!tpu.dma_semaphore, #tpu.memory_space<semaphore_mem>> -> memref<1x!tpu.dma_semaphore, #tpu.memory_space<semaphore_mem>>
      %92 = tpu.memref_squeeze %91 : memref<1x!tpu.dma_semaphore, #tpu.memory_space<semaphore_mem>> -> memref<!tpu.dma_semaphore, #tpu.memory_space<semaphore_mem>>
      tpu.enqueue_dma source(%88 : memref<1x128xf32, #tpu.memory_space<any>>) target(%90 : memref<1x128xf32, #tpu.memory_space<vmem>>) target_semaphore(%92 : memref<!tpu.dma_semaphore, #tpu.memory_space<semaphore_mem>>)
      %c3_i32 = arith.constant 3 : i32
      %93 = arith.addi %68, %c3_i32 : i32
      %94 = arith.index_cast %93 : i32 to index
      %95 = memref.load %arg2[%94] : memref<16xi32, #tpu.memory_space<smem>>
      %c0_i32_39 = arith.constant 0 : i32
      %96 = tpu.memref_slice %arg3[%95, %c0_i32_39] : memref<64x128xf32, #tpu.memory_space<any>> -> memref<1x128xf32, #tpu.memory_space<any>>
      %c0_i32_40 = arith.constant 0 : i32
      %97 = tpu.memref_slice %arg9[%11, %c3_i32, %c0_i32_40] : memref<2x8x128xf32, #tpu.memory_space<vmem>> -> memref<1x1x128xf32, #tpu.memory_space<vmem>>
      %98 = tpu.memref_squeeze %97 : memref<1x1x128xf32, #tpu.memory_space<vmem>> -> memref<1x128xf32, #tpu.memory_space<vmem>>
      %99 = tpu.memref_slice %arg10[%11] : memref<2x!tpu.dma_semaphore, #tpu.memory_space<semaphore_mem>> -> memref<1x!tpu.dma_semaphore, #tpu.memory_space<semaphore_mem>>
      %100 = tpu.memref_squeeze %99 : memref<1x!tpu.dma_semaphore, #tpu.memory_space<semaphore_mem>> -> memref<!tpu.dma_semaphore, #tpu.memory_space<semaphore_mem>>
      tpu.enqueue_dma source(%96 : memref<1x128xf32, #tpu.memory_space<any>>) target(%98 : memref<1x128xf32, #tpu.memory_space<vmem>>) target_semaphore(%100 : memref<!tpu.dma_semaphore, #tpu.memory_space<semaphore_mem>>)
      %c4_i32 = arith.constant 4 : i32
      %101 = arith.addi %68, %c4_i32 : i32
      %102 = arith.index_cast %101 : i32 to index
      %103 = memref.load %arg2[%102] : memref<16xi32, #tpu.memory_space<smem>>
      %c0_i32_41 = arith.constant 0 : i32
      %104 = tpu.memref_slice %arg3[%103, %c0_i32_41] : memref<64x128xf32, #tpu.memory_space<any>> -> memref<1x128xf32, #tpu.memory_space<any>>
      %c0_i32_42 = arith.constant 0 : i32
      %105 = tpu.memref_slice %arg9[%11, %c4_i32, %c0_i32_42] : memref<2x8x128xf32, #tpu.memory_space<vmem>> -> memref<1x1x128xf32, #tpu.memory_space<vmem>>
      %106 = tpu.memref_squeeze %105 : memref<1x1x128xf32, #tpu.memory_space<vmem>> -> memref<1x128xf32, #tpu.memory_space<vmem>>
      %107 = tpu.memref_slice %arg10[%11] : memref<2x!tpu.dma_semaphore, #tpu.memory_space<semaphore_mem>> -> memref<1x!tpu.dma_semaphore, #tpu.memory_space<semaphore_mem>>
      %108 = tpu.memref_squeeze %107 : memref<1x!tpu.dma_semaphore, #tpu.memory_space<semaphore_mem>> -> memref<!tpu.dma_semaphore, #tpu.memory_space<semaphore_mem>>
      tpu.enqueue_dma source(%104 : memref<1x128xf32, #tpu.memory_space<any>>) target(%106 : memref<1x128xf32, #tpu.memory_space<vmem>>) target_semaphore(%108 : memref<!tpu.dma_semaphore, #tpu.memory_space<semaphore_mem>>)
      %c5_i32 = arith.constant 5 : i32
      %109 = arith.addi %68, %c5_i32 : i32
      %110 = arith.index_cast %109 : i32 to index
      %111 = memref.load %arg2[%110] : memref<16xi32, #tpu.memory_space<smem>>
      %c0_i32_43 = arith.constant 0 : i32
      %112 = tpu.memref_slice %arg3[%111, %c0_i32_43] : memref<64x128xf32, #tpu.memory_space<any>> -> memref<1x128xf32, #tpu.memory_space<any>>
      %c0_i32_44 = arith.constant 0 : i32
      %113 = tpu.memref_slice %arg9[%11, %c5_i32, %c0_i32_44] : memref<2x8x128xf32, #tpu.memory_space<vmem>> -> memref<1x1x128xf32, #tpu.memory_space<vmem>>
      %114 = tpu.memref_squeeze %113 : memref<1x1x128xf32, #tpu.memory_space<vmem>> -> memref<1x128xf32, #tpu.memory_space<vmem>>
      %115 = tpu.memref_slice %arg10[%11] : memref<2x!tpu.dma_semaphore, #tpu.memory_space<semaphore_mem>> -> memref<1x!tpu.dma_semaphore, #tpu.memory_space<semaphore_mem>>
      %116 = tpu.memref_squeeze %115 : memref<1x!tpu.dma_semaphore, #tpu.memory_space<semaphore_mem>> -> memref<!tpu.dma_semaphore, #tpu.memory_space<semaphore_mem>>
      tpu.enqueue_dma source(%112 : memref<1x128xf32, #tpu.memory_space<any>>) target(%114 : memref<1x128xf32, #tpu.memory_space<vmem>>) target_semaphore(%116 : memref<!tpu.dma_semaphore, #tpu.memory_space<semaphore_mem>>)
      %c6_i32 = arith.constant 6 : i32
      %117 = arith.addi %68, %c6_i32 : i32
      %118 = arith.index_cast %117 : i32 to index
      %119 = memref.load %arg2[%118] : memref<16xi32, #tpu.memory_space<smem>>
      %c0_i32_45 = arith.constant 0 : i32
      %120 = tpu.memref_slice %arg3[%119, %c0_i32_45] : memref<64x128xf32, #tpu.memory_space<any>> -> memref<1x128xf32, #tpu.memory_space<any>>
      %c0_i32_46 = arith.constant 0 : i32
      %121 = tpu.memref_slice %arg9[%11, %c6_i32, %c0_i32_46] : memref<2x8x128xf32, #tpu.memory_space<vmem>> -> memref<1x1x128xf32, #tpu.memory_space<vmem>>
      %122 = tpu.memref_squeeze %121 : memref<1x1x128xf32, #tpu.memory_space<vmem>> -> memref<1x128xf32, #tpu.memory_space<vmem>>
      %123 = tpu.memref_slice %arg10[%11] : memref<2x!tpu.dma_semaphore, #tpu.memory_space<semaphore_mem>> -> memref<1x!tpu.dma_semaphore, #tpu.memory_space<semaphore_mem>>
      %124 = tpu.memref_squeeze %123 : memref<1x!tpu.dma_semaphore, #tpu.memory_space<semaphore_mem>> -> memref<!tpu.dma_semaphore, #tpu.memory_space<semaphore_mem>>
      tpu.enqueue_dma source(%120 : memref<1x128xf32, #tpu.memory_space<any>>) target(%122 : memref<1x128xf32, #tpu.memory_space<vmem>>) target_semaphore(%124 : memref<!tpu.dma_semaphore, #tpu.memory_space<semaphore_mem>>)
      %c7_i32 = arith.constant 7 : i32
      %125 = arith.addi %68, %c7_i32 : i32
      %126 = arith.index_cast %125 : i32 to index
      %127 = memref.load %arg2[%126] : memref<16xi32, #tpu.memory_space<smem>>
      %c0_i32_47 = arith.constant 0 : i32
      %128 = tpu.memref_slice %arg3[%127, %c0_i32_47] : memref<64x128xf32, #tpu.memory_space<any>> -> memref<1x128xf32, #tpu.memory_space<any>>
      %c0_i32_48 = arith.constant 0 : i32
      %129 = tpu.memref_slice %arg9[%11, %c7_i32, %c0_i32_48] : memref<2x8x128xf32, #tpu.memory_space<vmem>> -> memref<1x1x128xf32, #tpu.memory_space<vmem>>
      %130 = tpu.memref_squeeze %129 : memref<1x1x128xf32, #tpu.memory_space<vmem>> -> memref<1x128xf32, #tpu.memory_space<vmem>>
      %131 = tpu.memref_slice %arg10[%11] : memref<2x!tpu.dma_semaphore, #tpu.memory_space<semaphore_mem>> -> memref<1x!tpu.dma_semaphore, #tpu.memory_space<semaphore_mem>>
      %132 = tpu.memref_squeeze %131 : memref<1x!tpu.dma_semaphore, #tpu.memory_space<semaphore_mem>> -> memref<!tpu.dma_semaphore, #tpu.memory_space<semaphore_mem>>
      tpu.enqueue_dma source(%128 : memref<1x128xf32, #tpu.memory_space<any>>) target(%130 : memref<1x128xf32, #tpu.memory_space<vmem>>) target_semaphore(%132 : memref<!tpu.dma_semaphore, #tpu.memory_space<semaphore_mem>>)
      %c8_i32_49 = arith.constant 8 : i32
    } else {
    }
    %c1_i32_6 = arith.constant 1 : i32
    %15 = arith.addi %1, %c1_i32_6 : i32
    %c2_i32_7 = arith.constant 2 : i32
    %16 = arith.cmpi slt, %15, %c2_i32_7 : i32
    %17 = arith.extui %16 : i1 to i32
    %c0_i32_8 = arith.constant 0 : i32
    %18 = arith.cmpi ne, %17, %c0_i32_8 : i32
    scf.if %18 {
      %c1_i32_29 = arith.constant 1 : i32
      %66 = arith.addi %arg1, %c1_i32_29 : i32
      %c2_i32_30 = arith.constant 2 : i32
      %67 = arith.cmpi eq, %66, %c2_i32_30 : i32
      %c1_i32_31 = arith.constant 1 : i32
      %68 = arith.addi %arg0, %c1_i32_31 : i32
      %69 = arith.select %67, %68, %arg0 : i32
      %c0_i32_32 = arith.constant 0 : i32
      %70 = arith.select %67, %c0_i32_32, %66 : i32
      %c8_i32 = arith.constant 8 : i32
      %71 = arith.muli %70, %c8_i32 : i32
      %c8_i32_33 = arith.constant 8 : i32
      %72 = arith.muli %69, %c8_i32_33 : i32
      %73 = arith.addi %71, %72 : i32
      %c1_i32_34 = arith.constant 1 : i32
      %74 = arith.subi %c1_i32_34, %11 : i32
      %c0_i32_35 = arith.constant 0 : i32
      %75 = arith.addi %73, %c0_i32_35 : i32
      %76 = arith.index_cast %75 : i32 to index
      %77 = memref.load %arg2[%76] : memref<16xi32, #tpu.memory_space<smem>>
      %c0_i32_36 = arith.constant 0 : i32
      %78 = tpu.memref_slice %arg3[%77, %c0_i32_36] : memref<64x128xf32, #tpu.memory_space<any>> -> memref<1x128xf32, #tpu.memory_space<any>>
      %c0_i32_37 = arith.constant 0 : i32
      %79 = tpu.memref_slice %arg9[%74, %c0_i32_35, %c0_i32_37] : memref<2x8x128xf32, #tpu.memory_space<vmem>> -> memref<1x1x128xf32, #tpu.memory_space<vmem>>
      %80 = tpu.memref_squeeze %79 : memref<1x1x128xf32, #tpu.memory_space<vmem>> -> memref<1x128xf32, #tpu.memory_space<vmem>>
      %81 = tpu.memref_slice %arg10[%74] : memref<2x!tpu.dma_semaphore, #tpu.memory_space<semaphore_mem>> -> memref<1x!tpu.dma_semaphore, #tpu.memory_space<semaphore_mem>>
      %82 = tpu.memref_squeeze %81 : memref<1x!tpu.dma_semaphore, #tpu.memory_space<semaphore_mem>> -> memref<!tpu.dma_semaphore, #tpu.memory_space<semaphore_mem>>
      tpu.enqueue_dma source(%78 : memref<1x128xf32, #tpu.memory_space<any>>) target(%80 : memref<1x128xf32, #tpu.memory_space<vmem>>) target_semaphore(%82 : memref<!tpu.dma_semaphore, #tpu.memory_space<semaphore_mem>>)
      %c1_i32_38 = arith.constant 1 : i32
      %83 = arith.addi %73, %c1_i32_38 : i32
      %84 = arith.index_cast %83 : i32 to index
      %85 = memref.load %arg2[%84] : memref<16xi32, #tpu.memory_space<smem>>
      %c0_i32_39 = arith.constant 0 : i32
      %86 = tpu.memref_slice %arg3[%85, %c0_i32_39] : memref<64x128xf32, #tpu.memory_space<any>> -> memref<1x128xf32, #tpu.memory_space<any>>
      %c0_i32_40 = arith.constant 0 : i32
      %87 = tpu.memref_slice %arg9[%74, %c1_i32_38, %c0_i32_40] : memref<2x8x128xf32, #tpu.memory_space<vmem>> -> memref<1x1x128xf32, #tpu.memory_space<vmem>>
      %88 = tpu.memref_squeeze %87 : memref<1x1x128xf32, #tpu.memory_space<vmem>> -> memref<1x128xf32, #tpu.memory_space<vmem>>
      %89 = tpu.memref_slice %arg10[%74] : memref<2x!tpu.dma_semaphore, #tpu.memory_space<semaphore_mem>> -> memref<1x!tpu.dma_semaphore, #tpu.memory_space<semaphore_mem>>
      %90 = tpu.memref_squeeze %89 : memref<1x!tpu.dma_semaphore, #tpu.memory_space<semaphore_mem>> -> memref<!tpu.dma_semaphore, #tpu.memory_space<semaphore_mem>>
      tpu.enqueue_dma source(%86 : memref<1x128xf32, #tpu.memory_space<any>>) target(%88 : memref<1x128xf32, #tpu.memory_space<vmem>>) target_semaphore(%90 : memref<!tpu.dma_semaphore, #tpu.memory_space<semaphore_mem>>)
      %c2_i32_41 = arith.constant 2 : i32
      %91 = arith.addi %73, %c2_i32_41 : i32
      %92 = arith.index_cast %91 : i32 to index
      %93 = memref.load %arg2[%92] : memref<16xi32, #tpu.memory_space<smem>>
      %c0_i32_42 = arith.constant 0 : i32
      %94 = tpu.memref_slice %arg3[%93, %c0_i32_42] : memref<64x128xf32, #tpu.memory_space<any>> -> memref<1x128xf32, #tpu.memory_space<any>>
      %c0_i32_43 = arith.constant 0 : i32
      %95 = tpu.memref_slice %arg9[%74, %c2_i32_41, %c0_i32_43] : memref<2x8x128xf32, #tpu.memory_space<vmem>> -> memref<1x1x128xf32, #tpu.memory_space<vmem>>
      %96 = tpu.memref_squeeze %95 : memref<1x1x128xf32, #tpu.memory_space<vmem>> -> memref<1x128xf32, #tpu.memory_space<vmem>>
      %97 = tpu.memref_slice %arg10[%74] : memref<2x!tpu.dma_semaphore, #tpu.memory_space<semaphore_mem>> -> memref<1x!tpu.dma_semaphore, #tpu.memory_space<semaphore_mem>>
      %98 = tpu.memref_squeeze %97 : memref<1x!tpu.dma_semaphore, #tpu.memory_space<semaphore_mem>> -> memref<!tpu.dma_semaphore, #tpu.memory_space<semaphore_mem>>
      tpu.enqueue_dma source(%94 : memref<1x128xf32, #tpu.memory_space<any>>) target(%96 : memref<1x128xf32, #tpu.memory_space<vmem>>) target_semaphore(%98 : memref<!tpu.dma_semaphore, #tpu.memory_space<semaphore_mem>>)
      %c3_i32 = arith.constant 3 : i32
      %99 = arith.addi %73, %c3_i32 : i32
      %100 = arith.index_cast %99 : i32 to index
      %101 = memref.load %arg2[%100] : memref<16xi32, #tpu.memory_space<smem>>
      %c0_i32_44 = arith.constant 0 : i32
      %102 = tpu.memref_slice %arg3[%101, %c0_i32_44] : memref<64x128xf32, #tpu.memory_space<any>> -> memref<1x128xf32, #tpu.memory_space<any>>
      %c0_i32_45 = arith.constant 0 : i32
      %103 = tpu.memref_slice %arg9[%74, %c3_i32, %c0_i32_45] : memref<2x8x128xf32, #tpu.memory_space<vmem>> -> memref<1x1x128xf32, #tpu.memory_space<vmem>>
      %104 = tpu.memref_squeeze %103 : memref<1x1x128xf32, #tpu.memory_space<vmem>> -> memref<1x128xf32, #tpu.memory_space<vmem>>
      %105 = tpu.memref_slice %arg10[%74] : memref<2x!tpu.dma_semaphore, #tpu.memory_space<semaphore_mem>> -> memref<1x!tpu.dma_semaphore, #tpu.memory_space<semaphore_mem>>
      %106 = tpu.memref_squeeze %105 : memref<1x!tpu.dma_semaphore, #tpu.memory_space<semaphore_mem>> -> memref<!tpu.dma_semaphore, #tpu.memory_space<semaphore_mem>>
      tpu.enqueue_dma source(%102 : memref<1x128xf32, #tpu.memory_space<any>>) target(%104 : memref<1x128xf32, #tpu.memory_space<vmem>>) target_semaphore(%106 : memref<!tpu.dma_semaphore, #tpu.memory_space<semaphore_mem>>)
      %c4_i32 = arith.constant 4 : i32
      %107 = arith.addi %73, %c4_i32 : i32
      %108 = arith.index_cast %107 : i32 to index
      %109 = memref.load %arg2[%108] : memref<16xi32, #tpu.memory_space<smem>>
      %c0_i32_46 = arith.constant 0 : i32
      %110 = tpu.memref_slice %arg3[%109, %c0_i32_46] : memref<64x128xf32, #tpu.memory_space<any>> -> memref<1x128xf32, #tpu.memory_space<any>>
      %c0_i32_47 = arith.constant 0 : i32
      %111 = tpu.memref_slice %arg9[%74, %c4_i32, %c0_i32_47] : memref<2x8x128xf32, #tpu.memory_space<vmem>> -> memref<1x1x128xf32, #tpu.memory_space<vmem>>
      %112 = tpu.memref_squeeze %111 : memref<1x1x128xf32, #tpu.memory_space<vmem>> -> memref<1x128xf32, #tpu.memory_space<vmem>>
      %113 = tpu.memref_slice %arg10[%74] : memref<2x!tpu.dma_semaphore, #tpu.memory_space<semaphore_mem>> -> memref<1x!tpu.dma_semaphore, #tpu.memory_space<semaphore_mem>>
      %114 = tpu.memref_squeeze %113 : memref<1x!tpu.dma_semaphore, #tpu.memory_space<semaphore_mem>> -> memref<!tpu.dma_semaphore, #tpu.memory_space<semaphore_mem>>
      tpu.enqueue_dma source(%110 : memref<1x128xf32, #tpu.memory_space<any>>) target(%112 : memref<1x128xf32, #tpu.memory_space<vmem>>) target_semaphore(%114 : memref<!tpu.dma_semaphore, #tpu.memory_space<semaphore_mem>>)
      %c5_i32 = arith.constant 5 : i32
      %115 = arith.addi %73, %c5_i32 : i32
      %116 = arith.index_cast %115 : i32 to index
      %117 = memref.load %arg2[%116] : memref<16xi32, #tpu.memory_space<smem>>
      %c0_i32_48 = arith.constant 0 : i32
      %118 = tpu.memref_slice %arg3[%117, %c0_i32_48] : memref<64x128xf32, #tpu.memory_space<any>> -> memref<1x128xf32, #tpu.memory_space<any>>
      %c0_i32_49 = arith.constant 0 : i32
      %119 = tpu.memref_slice %arg9[%74, %c5_i32, %c0_i32_49] : memref<2x8x128xf32, #tpu.memory_space<vmem>> -> memref<1x1x128xf32, #tpu.memory_space<vmem>>
      %120 = tpu.memref_squeeze %119 : memref<1x1x128xf32, #tpu.memory_space<vmem>> -> memref<1x128xf32, #tpu.memory_space<vmem>>
      %121 = tpu.memref_slice %arg10[%74] : memref<2x!tpu.dma_semaphore, #tpu.memory_space<semaphore_mem>> -> memref<1x!tpu.dma_semaphore, #tpu.memory_space<semaphore_mem>>
      %122 = tpu.memref_squeeze %121 : memref<1x!tpu.dma_semaphore, #tpu.memory_space<semaphore_mem>> -> memref<!tpu.dma_semaphore, #tpu.memory_space<semaphore_mem>>
      tpu.enqueue_dma source(%118 : memref<1x128xf32, #tpu.memory_space<any>>) target(%120 : memref<1x128xf32, #tpu.memory_space<vmem>>) target_semaphore(%122 : memref<!tpu.dma_semaphore, #tpu.memory_space<semaphore_mem>>)
      %c6_i32 = arith.constant 6 : i32
      %123 = arith.addi %73, %c6_i32 : i32
      %124 = arith.index_cast %123 : i32 to index
      %125 = memref.load %arg2[%124] : memref<16xi32, #tpu.memory_space<smem>>
      %c0_i32_50 = arith.constant 0 : i32
      %126 = tpu.memref_slice %arg3[%125, %c0_i32_50] : memref<64x128xf32, #tpu.memory_space<any>> -> memref<1x128xf32, #tpu.memory_space<any>>
      %c0_i32_51 = arith.constant 0 : i32
      %127 = tpu.memref_slice %arg9[%74, %c6_i32, %c0_i32_51] : memref<2x8x128xf32, #tpu.memory_space<vmem>> -> memref<1x1x128xf32, #tpu.memory_space<vmem>>
      %128 = tpu.memref_squeeze %127 : memref<1x1x128xf32, #tpu.memory_space<vmem>> -> memref<1x128xf32, #tpu.memory_space<vmem>>
      %129 = tpu.memref_slice %arg10[%74] : memref<2x!tpu.dma_semaphore, #tpu.memory_space<semaphore_mem>> -> memref<1x!tpu.dma_semaphore, #tpu.memory_space<semaphore_mem>>
      %130 = tpu.memref_squeeze %129 : memref<1x!tpu.dma_semaphore, #tpu.memory_space<semaphore_mem>> -> memref<!tpu.dma_semaphore, #tpu.memory_space<semaphore_mem>>
      tpu.enqueue_dma source(%126 : memref<1x128xf32, #tpu.memory_space<any>>) target(%128 : memref<1x128xf32, #tpu.memory_space<vmem>>) target_semaphore(%130 : memref<!tpu.dma_semaphore, #tpu.memory_space<semaphore_mem>>)
      %c7_i32 = arith.constant 7 : i32
      %131 = arith.addi %73, %c7_i32 : i32
      %132 = arith.index_cast %131 : i32 to index
      %133 = memref.load %arg2[%132] : memref<16xi32, #tpu.memory_space<smem>>
      %c0_i32_52 = arith.constant 0 : i32
      %134 = tpu.memref_slice %arg3[%133, %c0_i32_52] : memref<64x128xf32, #tpu.memory_space<any>> -> memref<1x128xf32, #tpu.memory_space<any>>
      %c0_i32_53 = arith.constant 0 : i32
      %135 = tpu.memref_slice %arg9[%74, %c7_i32, %c0_i32_53] : memref<2x8x128xf32, #tpu.memory_space<vmem>> -> memref<1x1x128xf32, #tpu.memory_space<vmem>>
      %136 = tpu.memref_squeeze %135 : memref<1x1x128xf32, #tpu.memory_space<vmem>> -> memref<1x128xf32, #tpu.memory_space<vmem>>
      %137 = tpu.memref_slice %arg10[%74] : memref<2x!tpu.dma_semaphore, #tpu.memory_space<semaphore_mem>> -> memref<1x!tpu.dma_semaphore, #tpu.memory_space<semaphore_mem>>
      %138 = tpu.memref_squeeze %137 : memref<1x!tpu.dma_semaphore, #tpu.memory_space<semaphore_mem>> -> memref<!tpu.dma_semaphore, #tpu.memory_space<semaphore_mem>>
      tpu.enqueue_dma source(%134 : memref<1x128xf32, #tpu.memory_space<any>>) target(%136 : memref<1x128xf32, #tpu.memory_space<vmem>>) target_semaphore(%138 : memref<!tpu.dma_semaphore, #tpu.memory_space<semaphore_mem>>)
      %c8_i32_54 = arith.constant 8 : i32
    } else {
    }
    %c0_i32_9 = arith.constant 0 : i32
    %c0_i32_10 = arith.constant 0 : i32
    %19 = tpu.memref_slice %arg3[%c0_i32_9, %c0_i32_10] : memref<64x128xf32, #tpu.memory_space<any>> -> memref<8x128xf32, #tpu.memory_space<any>>
    %c0_i32_11 = arith.constant 0 : i32
    %c0_i32_12 = arith.constant 0 : i32
    %20 = tpu.memref_slice %arg9[%11, %c0_i32_11, %c0_i32_12] : memref<2x8x128xf32, #tpu.memory_space<vmem>> -> memref<1x8x128xf32, #tpu.memory_space<vmem>>
    %21 = tpu.memref_squeeze %20 : memref<1x8x128xf32, #tpu.memory_space<vmem>> -> memref<8x128xf32, #tpu.memory_space<vmem>>
    %22 = tpu.memref_slice %arg10[%11] : memref<2x!tpu.dma_semaphore, #tpu.memory_space<semaphore_mem>> -> memref<1x!tpu.dma_semaphore, #tpu.memory_space<semaphore_mem>>
    %23 = tpu.memref_squeeze %22 : memref<1x!tpu.dma_semaphore, #tpu.memory_space<semaphore_mem>> -> memref<!tpu.dma_semaphore, #tpu.memory_space<semaphore_mem>>
    tpu.wait_dma2 semaphore(%23 : memref<!tpu.dma_semaphore, #tpu.memory_space<semaphore_mem>>) src(%19 : memref<8x128xf32, #tpu.memory_space<any>>) dst(%21 : memref<8x128xf32, #tpu.memory_space<vmem>>)
    %24 = arith.index_cast %11 : i32 to index
    %c0 = arith.constant 0 : index
    %c0_13 = arith.constant 0 : index
    %25 = vector.load %arg9[%24, %c0, %c0_13] : memref<2x8x128xf32, #tpu.memory_space<vmem>>, vector<1x8x128xf32>
    %26 = vector.shape_cast %25 : vector<1x8x128xf32> to vector<8x128xf32>
    %c0_14 = arith.constant 0 : index
    %c0_15 = arith.constant 0 : index
    %27 = vector.load %arg5[%c0_14, %c0_15] : memref<8x128xf32, #tpu.memory_space<vmem>>, vector<8x128xf32>
    %c0_16 = arith.constant 0 : index
    %c0_17 = arith.constant 0 : index
    %28 = vector.load %arg4[%c0_16, %c0_17] : memref<8x1xi32, #tpu.memory_space<vmem>>, vector<8x1xi32>
    %c0_18 = arith.constant 0 : index
    %c0_19 = arith.constant 0 : index
    %29 = vector.load %arg6[%c0_18, %c0_19] : memref<2x128xf32, #tpu.memory_space<vmem>>, vector<2x128xf32>
    %30 = vector.extract_strided_slice %29 {offsets = [0, 0], sizes = [1, 128], strides = [1, 1]} : vector<2x128xf32> to vector<1x128xf32>
    %31 = arith.sitofp %28 : vector<8x1xi32> to vector<8x1xf32>
    %32 = vector.extract_strided_slice %29 {offsets = [1, 0], sizes = [1, 128], strides = [1, 1]} : vector<2x128xf32> to vector<1x128xf32>
    %33 = arith.subf %32, %30 : vector<1x128xf32>
    %34 = vector.broadcast %31 : vector<8x1xf32> to vector<8x128xf32>
    %35 = vector.broadcast %33 : vector<1x128xf32> to vector<8x128xf32>
    %36 = arith.mulf %34, %35 : vector<8x128xf32>
    %37 = vector.broadcast %30 : vector<1x128xf32> to vector<8x128xf32>
    %38 = arith.addf %37, %36 : vector<8x128xf32>
    %39 = arith.addf %26, %27 : vector<8x128xf32>
    %40 = arith.addf %39, %38 : vector<8x128xf32>
    %cst = arith.constant dense<0.000000e+00> : vector<8xf32>
    %41 = vector.multi_reduction <add>, %40, %cst [1] : vector<8x128xf32> to vector<8xf32>
    %42 = vector.shape_cast %41 : vector<8xf32> to vector<8x1xf32>
    %cst_20 = arith.constant 1.280000e+02 : f32
    %43 = vector.broadcast %cst_20 : f32 to vector<8x1xf32>
    %44 = arith.divf %42, %43 : vector<8x1xf32>
    %45 = vector.broadcast %44 : vector<8x1xf32> to vector<8x128xf32>
    %46 = arith.subf %40, %45 : vector<8x128xf32>
    %47 = arith.mulf %46, %46 : vector<8x128xf32>
    %cst_21 = arith.constant dense<0.000000e+00> : vector<8xf32>
    %48 = vector.multi_reduction <add>, %47, %cst_21 [1] : vector<8x128xf32> to vector<8xf32>
    %49 = vector.shape_cast %48 : vector<8xf32> to vector<8x1xf32>
    %cst_22 = arith.constant 1.280000e+02 : f32
    %50 = vector.broadcast %cst_22 : f32 to vector<8x1xf32>
    %51 = arith.divf %49, %50 : vector<8x1xf32>
    %52 = vector.broadcast %44 : vector<8x1xf32> to vector<8x128xf32>
    %53 = arith.subf %40, %52 : vector<8x128xf32>
    %cst_23 = arith.constant 9.99999996E-13 : f32
    %54 = vector.broadcast %cst_23 : f32 to vector<8x1xf32>
    %55 = arith.addf %51, %54 : vector<8x1xf32>
    %56 = math.rsqrt %55 : vector<8x1xf32>
    %57 = vector.broadcast %56 : vector<8x1xf32> to vector<8x128xf32>
    %58 = arith.mulf %53, %57 : vector<8x128xf32>
    %c0_24 = arith.constant 0 : index
    %c0_25 = arith.constant 0 : index
    %59 = vector.load %arg7[%c0_24, %c0_25] : memref<2x128xf32, #tpu.memory_space<vmem>>, vector<1x128xf32>
    %c1 = arith.constant 1 : index
    %c0_26 = arith.constant 0 : index
    %60 = vector.load %arg7[%c1, %c0_26] : memref<2x128xf32, #tpu.memory_space<vmem>>, vector<1x128xf32>
    %61 = vector.broadcast %59 : vector<1x128xf32> to vector<8x128xf32>
    %62 = arith.mulf %58, %61 : vector<8x128xf32>
    %63 = vector.broadcast %60 : vector<1x128xf32> to vector<8x128xf32>
    %64 = arith.addf %62, %63 : vector<8x128xf32>
    %c0_27 = arith.constant 0 : index
    %c0_28 = arith.constant 0 : index
    %65 = vector.load %arg8[%c0_27, %c0_28] : memref<8x128xf32, #tpu.memory_space<vmem>>, vector<8x128xf32>
    tpu.vector_store %arg8[%c0_27, %c0_28], %64 {strides = array<i32>} : memref<8x128xf32, #tpu.memory_space<vmem>>, vector<8x128xf32>,
    return
  }
  func.func @transform_1(%arg0: i32, %arg1: i32, %arg2: memref<16xi32, #tpu.memory_space<smem>>) -> (i32, i32) {
    %c1_i32 = arith.constant 1 : i32
    %0 = arith.muli %arg1, %c1_i32 : i32
    %1 = arith.addi %0, %arg0 : i32
    %c0_i32 = arith.constant 0 : i32
    %c0_i32_0 = arith.constant 0 : i32
    return %1, %c0_i32 : i32, i32
  }
  func.func @transform_2(%arg0: i32, %arg1: i32, %arg2: memref<16xi32, #tpu.memory_space<smem>>) -> (i32, i32) {
    %c0_i32 = arith.constant 0 : i32
    %c0_i32_0 = arith.constant 0 : i32
    return %arg0, %c0_i32 : i32, i32
  }
  func.func @transform_3(%arg0: i32, %arg1: i32, %arg2: memref<16xi32, #tpu.memory_space<smem>>) -> (i32, i32) {
    %c0_i32 = arith.constant 0 : i32
    %c0_i32_0 = arith.constant 0 : i32
    %c0_i32_1 = arith.constant 0 : i32
    return %c0_i32, %c0_i32_0 : i32, i32
  }
  func.func @transform_4(%arg0: i32, %arg1: i32, %arg2: memref<16xi32, #tpu.memory_space<smem>>) -> (i32, i32) {
    %c0_i32 = arith.constant 0 : i32
    %c0_i32_0 = arith.constant 0 : i32
    %c0_i32_1 = arith.constant 0 : i32
    return %c0_i32, %c0_i32_0 : i32, i32
  }
  func.func @transform_5(%arg0: i32, %arg1: i32, %arg2: memref<16xi32, #tpu.memory_space<smem>>) -> (i32, i32) {
    %c1_i32 = arith.constant 1 : i32
    %0 = arith.muli %arg1, %c1_i32 : i32
    %1 = arith.addi %0, %arg0 : i32
    %c0_i32 = arith.constant 0 : i32
    %c0_i32_0 = arith.constant 0 : i32
    return %1, %c0_i32 : i32, i32
  }
}

</mosaic_0001>

<llo_original>
// kernel: tpu_custom_call.1
$region0: #{tpu_custom_call.1}
  #allocation0 [shape = 'u32[]', space=smem, size = 0x4, offset = 0x4, fixed_abs, tag = 'smem constant byte address 0x4 - core index']
  #allocation1 [shape = 'u32[144,128]{1,0:T(1,128)}', space=vmem, size = 0x12000, scoped, tag = 'internal scratch']
  #allocation2 [shape = 'f32[2,8,128]{2,1,0:T(8,128)}', space=vmem, size = 0x2000, scoped, tag = 'scratch operand']
  #allocation3 [shape = 's32[2]{0}', space=sflag, size = 0x8, scoped, tag = 'scratch operand']
  #allocation4 [shape = 's32[1]{0}', space=sflag, size = 0x4, scoped, tag = 'scoped memory for tpu_custom_call.1']
  #allocation5 [shape = 'u8[512]{0}', space=smem, size = 0x200, scoped, tag = 'prefetched SMEM operand 0']
  #allocation8 [shape = 's32[]', space=sflag, size = 0x4, offset = 0, fixed_abs, tag = 'sflag constant byte address 0x0 - dummy sync flag']
  #allocation9 [shape = 's32[]', space=sflag, size = 0x4, offset = 0, fixed_abs, tag = 'sflag constant byte address 0x0 - dummy sync flag']
  #allocation10 [shape = 'u32[]', space=smem, size = 0x4, offset = 0x44, fixed_abs, tag = 'smem constant byte address 0x44 - assertion arg 0']
  #allocation11 [shape = 'u32[]', space=smem, size = 0x4, offset = 0x48, fixed_abs, tag = 'smem constant byte address 0x48 - assertion arg 1']
  #allocation12 [shape = 's32[]', space=sflag, size = 0x4, offset = 0, fixed_abs, tag = 'sflag constant byte address 0x0 - dummy sync flag']
  #allocation13 [shape = 's32[]', space=sflag, size = 0x4, offset = 0, fixed_abs, tag = 'sflag constant byte address 0x0 - dummy sync flag']
  #allocation14 [shape = 's32[]', space=sflag, size = 0x4, offset = 0, fixed_abs, tag = 'sflag constant byte address 0x0 - dummy sync flag']
  #allocation15 [shape = 's32[]', space=sflag, size = 0x4, offset = 0, fixed_abs, tag = 'sflag constant byte address 0x0 - dummy sync flag']
  #allocation16 [shape = 's32[]', space=sflag, size = 0x4, offset = 0, fixed_abs, tag = 'sflag constant byte address 0x0 - dummy sync flag']
  #allocation17 [shape = 's32[]', space=sflag, size = 0x4, offset = 0, fixed_abs, tag = 'sflag constant byte address 0x0 - dummy sync flag']
  #allocation18 [shape = 's32[]', space=sflag, size = 0x4, offset = 0, fixed_abs, tag = 'sflag constant byte address 0x0 - dummy sync flag']
  #allocation19 [shape = 's32[]', space=sflag, size = 0x4, offset = 0, fixed_abs, tag = 'sflag constant byte address 0x0 - dummy sync flag']
  #allocation20 [shape = 's32[]', space=sflag, size = 0x4, offset = 0, fixed_abs, tag = 'sflag constant byte address 0x0 - dummy sync flag']
  #allocation21 [shape = 's32[]', space=sflag, size = 0x4, offset = 0, fixed_abs, tag = 'sflag constant byte address 0x0 - dummy sync flag']
  #allocation22 [shape = 's32[]', space=sflag, size = 0x4, offset = 0, fixed_abs, tag = 'sflag constant byte address 0x0 - dummy sync flag']
  #allocation23 [shape = 's32[]', space=sflag, size = 0x4, offset = 0, fixed_abs, tag = 'sflag constant byte address 0x0 - dummy sync flag']
  #allocation24 [shape = 's32[]', space=sflag, size = 0x4, offset = 0, fixed_abs, tag = 'sflag constant byte address 0x0 - dummy sync flag']
  #allocation25 [shape = 's32[]', space=sflag, size = 0x4, offset = 0, fixed_abs, tag = 'sflag constant byte address 0x0 - dummy sync flag']
  #allocation26 [shape = 's32[]', space=sflag, size = 0x4, offset = 0, fixed_abs, tag = 'sflag constant byte address 0x0 - dummy sync flag']
  #allocation27 [shape = 's32[]', space=sflag, size = 0x4, offset = 0, fixed_abs, tag = 'sflag constant byte address 0x0 - dummy sync flag']
  #allocation28 [shape = 's32[]', space=sflag, size = 0x4, offset = 0, fixed_abs, tag = 'sflag constant byte address 0x0 - dummy sync flag']
  #allocation29 [shape = 's32[]', space=sflag, size = 0x4, offset = 0, fixed_abs, tag = 'sflag constant byte address 0x0 - dummy sync flag']
  #allocation30 [shape = 's32[]', space=sflag, size = 0x4, offset = 0, fixed_abs, tag = 'sflag constant byte address 0x0 - dummy sync flag']
  #allocation31 [shape = 's32[]', space=sflag, size = 0x4, offset = 0, fixed_abs, tag = 'sflag constant byte address 0x0 - dummy sync flag']
  #allocation32 [shape = 's32[]', space=sflag, size = 0x4, offset = 0, fixed_abs, tag = 'sflag constant byte address 0x0 - dummy sync flag']
  #allocation33 [shape = 's32[]', space=sflag, size = 0x4, offset = 0, fixed_abs, tag = 'sflag constant byte address 0x0 - dummy sync flag']
  #allocation34 [shape = 's32[]', space=sflag, size = 0x4, offset = 0, fixed_abs, tag = 'sflag constant byte address 0x0 - dummy sync flag']
  #allocation35 [shape = 's32[]', space=sflag, size = 0x4, offset = 0, fixed_abs, tag = 'sflag constant byte address 0x0 - dummy sync flag']
  #allocation36 [shape = 's32[]', space=sflag, size = 0x4, offset = 0, fixed_abs, tag = 'sflag constant byte address 0x0 - dummy sync flag']
  #allocation37 [shape = 's32[]', space=sflag, size = 0x4, offset = 0, fixed_abs, tag = 'sflag constant byte address 0x0 - dummy sync flag']
  #allocation38 [shape = 's32[]', space=sflag, size = 0x4, offset = 0, fixed_abs, tag = 'sflag constant byte address 0x0 - dummy sync flag']
  #allocation39 [shape = 's32[]', space=sflag, size = 0x4, offset = 0, fixed_abs, tag = 'sflag constant byte address 0x0 - dummy sync flag']
  #allocation40 [shape = 's32[]', space=sflag, size = 0x4, offset = 0, fixed_abs, tag = 'sflag constant byte address 0x0 - dummy sync flag']
  #allocation41 [shape = 's32[]', space=sflag, size = 0x4, offset = 0, fixed_abs, tag = 'sflag constant byte address 0x0 - dummy sync flag']
  %s0 = inlined_call_operand.vmem [shape: s32[16], index: 0, kind: input, shape index: {}]
  %s1 = inlined_call_operand.hbm [shape: f32[64,128], index: 1, kind: input, shape index: {}]
  %s2 = inlined_call_operand.vmem [shape: s32[16,1], index: 2, kind: input, shape index: {}]
  %s3 = inlined_call_operand.vmem [shape: f32[8,128], index: 3, kind: input, shape index: {}]
  %s4 = inlined_call_operand.vmem [shape: f32[2,128], index: 4, kind: input, shape index: {}]
  %s5 = inlined_call_operand.vmem [shape: f32[2,128], index: 5, kind: input, shape index: {}]
  %s6 = inlined_call_operand.hbm [shape: f32[16,128], index: 6, kind: output, shape index: {}]
  %s7 = sld [smem:[#allocation0]]
  $region121: #{tpu_custom_call.1} parent=0
    _
  %s9 = ssub.s32 1, %s7
  %s10 = scalar_select 0, %s9, %s7
  %s11 = sshll.u32 %s0, 4
  %s12 = int_to_ptr.vmem [resolvable:$true] %s11
  %14 = dma.vmem_to_smem %s12, 16, [#allocation5], [#allocation4]
  %15 = dma.done [#allocation4], 16
  %16 = sfence
  $region1: #{tpu_custom_call.1} parent=0
    #allocation6 [shape = 'u8[8192]{0}', space=vmem, size = 0x2000, scoped, tag = 'output window, operand 0']
    #allocation7 [shape = 's32[2]{0}', space=sflag, size = 0x8, scoped, tag = 'scoped memory for tpu_custom_call.1']
    %17 = vsyncpa [#allocation7], 0
    %s18 = scalar_lea.sflag [#allocation7], 1
    %19 = vsyncpa %s18, 0
    loop: start=0, step=1, limit=4
    $region2: #{tpu_custom_call.1} parent=1 // loop_pre_header
      _
    $region3: #{tpu_custom_call.1} parent=1 // loop_header
      %s21 = sphi 0, %s25
      %p22 = scmp.ge.s32.totalorder %s21, 4
      %s28 = sphi 0, %s40
      %s29 = sphi 0, %s36
      %s30 = sphi 0, %s28
      %s31 = sphi 0, %s29
      %s32 = sphi 0, %s30
      %s33 = sphi 0, %s31
      %s45 = sphi 0, %s47
      %s48 = sphi 0, %s45
      %s49 = sphi 0, %s48
      %s65 = sphi 0, %s49
      %s71 = sphi 0, %s73
      %s74 = sphi 0, %s71
      %s75 = sphi 0, %s74
      %s91 = sphi 0, %s75
      %s95 = sphi 0, %s95
      %s97 = sphi 0, %s95
      %s98 = sphi 0, %s97
      %s112 = sphi 0, %s98
      %s116 = sphi 0, %s116
      %s118 = sphi 0, %s116
      %s119 = sphi 0, %s118
      %s133 = sphi 0, %s119
      %s141 = sphi 0, %s143
      %s144 = sphi 0, %s141
      %s145 = sphi 0, %s144
      %s161 = sphi 0, %s145
    $region4: #{tpu_custom_call.1} parent=1 // loop_header_branch
      %24 = sbr.rel (%p22) target = $region8
    $region5: #{tpu_custom_call.1} parent=1 // loop_body
      %s26 = ssub.s32 %s21, 1
      %s27 = ssub.s32 %s21, 2
      %s34 = sadd.s32 1, %s29
      %p35 = scmp.ge.s32.totalorder %s34, 2
      %s36 = scalar_select %p35, 0, %s34
      %s37 = sadd.s32 1, %s28
      %s38 = scalar_select %p35, %s37, %s28
      %p39 = scmp.ge.s32.totalorder %s38, 1
      %s40 = scalar_select %p39, 0, %s38
      %s41 = sadd.s32 %s29, %s28
      %s42 = sadd.s32 %s36, %s40
      %s43 = ssub.s32 %s41, %s42
      %p44 = scmp.eq.s32.totalorder %s43, 0
      %s46 = sadd.s32 %s45, 1
      %s47 = scalar_select %p44, %s45, %s46
      %p50 = pneg %p44
      %p51 = scmp.eq.s32.totalorder %s21, 1
      %p52 = por %p50, %p51
      %p53 = scmp.ne.s32.totalorder %s45, %s48
      %p54 = scmp.eq.s32.totalorder %s21, 0
      %p55 = por %p53, %p54
      %p56 = scmp.ne.s32.totalorder %s45, %s48
      %p57 = scmp.eq.s32.totalorder %s26, 1
      %p58 = por %p56, %p57
      %p59 = scmp.ne.s32.totalorder %s48, %s49
      %p60 = scmp.eq.s32.totalorder %s26, 0
      %p61 = por %p59, %p60
      %p62 = scmp.ne.s32.totalorder %s48, %s49
      %p63 = scmp.eq.s32.totalorder %s27, 1
      %p64 = por %p62, %p63
      %p66 = scmp.ne.s32.totalorder %s49, %s65
      %p67 = scmp.eq.s32.totalorder %s27, 0
      %p68 = por %p66, %p67
      %s69 = ssub.s32 %s28, %s40
      %p70 = scmp.eq.s32.totalorder %s69, 0
      %s72 = sadd.s32 %s71, 1
      %s73 = scalar_select %p70, %s71, %s72
      %p76 = pneg %p70
      %p77 = scmp.eq.s32.totalorder %s21, 1
      %p78 = por %p76, %p77
      %p79 = scmp.ne.s32.totalorder %s71, %s74
      %p80 = scmp.eq.s32.totalorder %s21, 0
      %p81 = por %p79, %p80
      %p82 = scmp.ne.s32.totalorder %s71, %s74
      %p83 = scmp.eq.s32.totalorder %s26, 1
      %p84 = por %p82, %p83
      %p85 = scmp.ne.s32.totalorder %s74, %s75
      %p86 = scmp.eq.s32.totalorder %s26, 0
      %p87 = por %p85, %p86
      %p88 = scmp.ne.s32.totalorder %s74, %s75
      %p89 = scmp.eq.s32.totalorder %s27, 1
      %p90 = por %p88, %p89
      %p92 = scmp.ne.s32.totalorder %s75, %s91
      %p93 = scmp.eq.s32.totalorder %s27, 0
      %p94 = por %p92, %p93
      %s96 = sadd.s32 %s95, 1
      %p99 = scmp.eq.s32.totalorder %s21, 1
      %p100 = scmp.ne.s32.totalorder %s95, %s97
      %p101 = scmp.eq.s32.totalorder %s21, 0
      %p102 = por %p100, %p101
      %p103 = scmp.ne.s32.totalorder %s95, %s97
      %p104 = scmp.eq.s32.totalorder %s26, 1
      %p105 = por %p103, %p104
      %p106 = scmp.ne.s32.totalorder %s97, %s98
      %p107 = scmp.eq.s32.totalorder %s26, 0
      %p108 = por %p106, %p107
      %p109 = scmp.ne.s32.totalorder %s97, %s98
      %p110 = scmp.eq.s32.totalorder %s27, 1
      %p111 = por %p109, %p110
      %p113 = scmp.ne.s32.totalorder %s98, %s112
      %p114 = scmp.eq.s32.totalorder %s27, 0
      %p115 = por %p113, %p114
      %s117 = sadd.s32 %s116, 1
      %p120 = scmp.eq.s32.totalorder %s21, 1
      %p121 = scmp.ne.s32.totalorder %s116, %s118
      %p122 = scmp.eq.s32.totalorder %s21, 0
      %p123 = por %p121, %p122
      %p124 = scmp.ne.s32.totalorder %s116, %s118
      %p125 = scmp.eq.s32.totalorder %s26, 1
      %p126 = por %p124, %p125
      %p127 = scmp.ne.s32.totalorder %s118, %s119
      %p128 = scmp.eq.s32.totalorder %s26, 0
      %p129 = por %p127, %p128
      %p130 = scmp.ne.s32.totalorder %s118, %s119
      %p131 = scmp.eq.s32.totalorder %s27, 1
      %p132 = por %p130, %p131
      %p134 = scmp.ne.s32.totalorder %s119, %s133
      %p135 = scmp.eq.s32.totalorder %s27, 0
      %p136 = por %p134, %p135
      %s137 = sadd.s32 %s29, %s28
      %s138 = sadd.s32 %s36, %s40
      %s139 = ssub.s32 %s137, %s138
      %p140 = scmp.eq.s32.totalorder %s139, 0
      %s142 = sadd.s32 %s141, 1
      %s143 = scalar_select %p140, %s141, %s142
      %p146 = pneg %p140
      %p147 = scmp.eq.s32.totalorder %s21, 1
      %p148 = por %p146, %p147
      %p149 = scmp.ne.s32.totalorder %s141, %s144
      %p150 = scmp.eq.s32.totalorder %s21, 0
      %p151 = por %p149, %p150
      %p152 = scmp.ne.s32.totalorder %s141, %s144
      %p153 = scmp.eq.s32.totalorder %s26, 1
      %p154 = por %p152, %p153
      %p155 = scmp.ne.s32.totalorder %s144, %s145
      %p156 = scmp.eq.s32.totalorder %s26, 0
      %p157 = por %p155, %p156
      %p158 = scmp.ne.s32.totalorder %s144, %s145
      %p159 = scmp.eq.s32.totalorder %s27, 1
      %p160 = por %p158, %p159
      %p162 = scmp.ne.s32.totalorder %s145, %s161
      %p163 = scmp.eq.s32.totalorder %s27, 0
      %p164 = por %p162, %p163
      %p165 = scmp.le.s32.totalorder 1, %s21
      %p166 = scmp.lt.s32.totalorder %s21, 3
      %p167 = pnand %p165, %p166
      %p168 = pneg %p167
      // Predicated region
      $region9: #{tpu_custom_call.1} parent=5 // pred_check
        _
      $region10: #{tpu_custom_call.1} parent=5 // pred_check_branch
        %170 = sbr.rel (%p167) target = $region12
      $region11: #{tpu_custom_call.1} parent=5 // pred_region
        %s171 = ssub.s32 %s21, 1
        // Predicated region
        $region13: #{tpu_custom_call.1} parent=11 // pred_check
          %p172 = pneg %p87
        $region14: #{tpu_custom_call.1} parent=11 // pred_check_branch
          %174 = sbr.rel (%p172) target = $region16
        $region15: #{tpu_custom_call.1} parent=11 // pred_region
          %p175 = scmp.lt.s32.totalorder %s30, 0
          %s176 = scalar_select %p175, %s30, 0
          %s177 = smul.addr %s176, 8
          %s178 = scalar_lea.vmem %s3, %s177
        $region16: #{tpu_custom_call.1} parent=11 // pred_fallthru
          _
        // Predicated region
        $region17: #{tpu_custom_call.1} parent=11 // pred_check
          %p179 = pneg %p108
        $region18: #{tpu_custom_call.1} parent=11 // pred_check_branch
          %181 = sbr.rel (%p179) target = $region20
        $region19: #{tpu_custom_call.1} parent=11 // pred_region
          _
        $region20: #{tpu_custom_call.1} parent=11 // pred_fallthru
          _
        // Predicated region
        $region21: #{tpu_custom_call.1} parent=11 // pred_check
          %p182 = pneg %p129
        $region22: #{tpu_custom_call.1} parent=11 // pred_check_branch
          %184 = sbr.rel (%p182) target = $region24
        $region23: #{tpu_custom_call.1} parent=11 // pred_region
          _
        $region24: #{tpu_custom_call.1} parent=11 // pred_fallthru
          _
      $region12: #{tpu_custom_call.1} parent=5 // pred_fallthru
        _
      %p185 = scmp.lt.s32.totalorder %s21, 2
      // Predicated region
      $region25: #{tpu_custom_call.1} parent=5 // pred_check
        %p186 = pneg %p185
      $region26: #{tpu_custom_call.1} parent=5 // pred_check_branch
        %188 = sbr.rel (%p186) target = $region28
      $region27: #{tpu_custom_call.1} parent=5 // pred_region
        // Predicated region
        $region29: #{tpu_custom_call.1} parent=27 // pred_check
          %p189 = pneg %p55
        $region30: #{tpu_custom_call.1} parent=27 // pred_check_branch
          %191 = sbr.rel (%p189) target = $region32
        $region31: #{tpu_custom_call.1} parent=27 // pred_region
          %s192 = sadd.s32 %s29, %s28
          %p193 = scmp.lt.s32.totalorder %s192, 1
          %s194 = scalar_select %p193, %s192, 1
          %s195 = smul.addr %s194, 8
          %s196 = scalar_lea.vmem %s2, %s195
          %s197 = sadd.s32 %s29, %s28
        $region32: #{tpu_custom_call.1} parent=27 // pred_fallthru
          _
      $region28: #{tpu_custom_call.1} parent=5 // pred_fallthru
        _
      %p198 = scmp.le.s32.totalorder 1, %s21
      %p199 = scmp.lt.s32.totalorder %s21, 3
      %p200 = pnand %p198, %p199
      %p201 = pneg %p200
      // Predicated region
      $region33: #{tpu_custom_call.1} parent=5 // pred_check
        _
      $region34: #{tpu_custom_call.1} parent=5 // pred_check_branch
        %203 = sbr.rel (%p200) target = $region36
      $region35: #{tpu_custom_call.1} parent=5 // pred_region
        %s204 = ssub.s32 %s21, 1
        %s205 = sadd.s32 %s31, %s30
        %p206 = scmp.lt.s32.totalorder %s205, 1
        %s207 = scalar_select %p206, %s205, 1
        %s208 = smul.addr %s207, 8
        %s209 = scalar_lea.vmem %s2, %s208
        %p210 = pneg %p61
        %p211 = pneg %p58
        %p212 = scmp.lt.s32.totalorder %s30, 0
        %s213 = scalar_select %p212, %s30, 0
        %s214 = smul.addr %s213, 8
        %s215 = scalar_lea.vmem %s3, %s214
        %p216 = pneg %p87
        %p217 = pneg %p84
        %p218 = pneg %p108
        %p219 = pneg %p105
        %p220 = pneg %p129
        %p221 = pneg %p126
        %p222 = pneg %p157
        %p223 = pneg %p154
        %s224 = sand.u32 %s144, 1
        %s225 = scalar_lea.sflag [#allocation7], %s224
        %s226 = sand.u32 %s144, 1
        %s227 = smul.addr %s226, 8
        %s228 = scalar_lea.vmem [#allocation6], %s227
        %s229 = sadd.s32 %s31, %s30
        %p230 = scmp.lt.s32.totalorder %s229, 1
        %s231 = scalar_select %p230, %s229, 1
        %s232 = smul.addr %s231, 8
        %s233 = scalar_lea.vmem %s2, %s232
        %s234 = sadd.s32 %s31, %s30
        %p235 = scmp.lt.s32.totalorder %s30, 0
        %s236 = scalar_select %p235, %s30, 0
        %s237 = smul.addr %s236, 8
        %s238 = scalar_lea.vmem %s3, %s237
        %s239 = sadd.s32 %s31, %s30
        %s240 = smul.u32 %s30, 2
        %s241 = sadd.s32 %s240, %s31
        %p242 = scmp.lt.s32.totalorder %s241, 0
        %s243 = ssub.s32 0, %s241
        %s244 = scalar_select %p242, %s243, %s241
        %s245 = sand.u32 %s244, 1
        %s246 = ssub.s32 0, %s245
        %s247 = scalar_select %p242, %s246, %s245
        %p248 = scmp.ne.s32.totalorder %s247, 0
        %p249 = scmp.lt.s32.totalorder %s247, 0
        %p250 = pnand %p249, %p248
        %p251 = pneg %p250
        %s252 = sadd.s32 %s247, 2
        %s253 = scalar_select %p251, %s252, %s247
        %p254 = scmp.eq.s32.totalorder %s241, 0
        // Predicated region
        $region37: #{tpu_custom_call.1} parent=35 // pred_check
          %p255 = pneg %p254
        $region38: #{tpu_custom_call.1} parent=35 // pred_check_branch
          %257 = sbr.rel (%p255) target = $region40
        $region39: #{tpu_custom_call.1} parent=35 // pred_region
          %s258 = smul.u32 %s31, 8
          %s259 = smul.u32 %s30, 8
          %s260 = sadd.s32 %s258, %s259
          %s261 = sld [smem:[#allocation5 + %s260]]
          %s262 = smul.addr %s261, 16
          %s263 = scalar_lea.hbm %s1, %s262
          %s264 = smul.u32 %s253, 8
          %s265 = scalar_lea.vmem [#allocation2], %s264
          %s266 = scalar_lea.sflag [#allocation3], %s253
          // Predicated region
          $region41: #{tpu_custom_call.1} parent=39 // pred_check
            _
          $region42: #{tpu_custom_call.1} parent=39 // pred_check_branch
            %268 = sbr.rel target = $region44
          $region43: #{tpu_custom_call.1} parent=39 // pred_region
            %269 = sst [smem:[#allocation10]] [#allocation9]
            %270 = sst [smem:[#allocation11]] [#allocation8]
          $region44: #{tpu_custom_call.1} parent=39 // pred_fallthru
            _
          %272 = shalt.err (0)
          %s274 = sshll.u32 %s265, 4
          %s275 = int_to_ptr.vmem [resolvable:$true] %s274
          %277 = dma.hbm_to_vmem [thread:$0]  %s263, 16, %s275, %s266
          %s278 = sadd.s32 %s260, 1
          %s279 = sld [smem:[#allocation5 + %s278]]
          %s280 = smul.addr %s279, 16
          %s281 = scalar_lea.hbm %s1, %s280
          %s282 = sadd.s32 1, %s264
          %s283 = scalar_lea.vmem [#allocation2], %s282
          // Predicated region
          $region45: #{tpu_custom_call.1} parent=39 // pred_check
            _
          $region46: #{tpu_custom_call.1} parent=39 // pred_check_branch
            %285 = sbr.rel target = $region48
          $region47: #{tpu_custom_call.1} parent=39 // pred_region
            %286 = sst [smem:[#allocation10]] [#allocation13]
            %287 = sst [smem:[#allocation11]] [#allocation12]
          $region48: #{tpu_custom_call.1} parent=39 // pred_fallthru
            _
          %289 = shalt.err (0)
          %s291 = sshll.u32 %s283, 4
          %s292 = int_to_ptr.vmem [resolvable:$true] %s291
          %294 = dma.hbm_to_vmem [thread:$0]  %s281, 16, %s292, %s266
          %s295 = sadd.s32 %s260, 2
          %s296 = sld [smem:[#allocation5 + %s295]]
          %s297 = smul.addr %s296, 16
          %s298 = scalar_lea.hbm %s1, %s297
          %s299 = sadd.s32 2, %s264
          %s300 = scalar_lea.vmem [#allocation2], %s299
          // Predicated region
          $region49: #{tpu_custom_call.1} parent=39 // pred_check
            _
          $region50: #{tpu_custom_call.1} parent=39 // pred_check_branch
            %302 = sbr.rel target = $region52
          $region51: #{tpu_custom_call.1} parent=39 // pred_region
            %303 = sst [smem:[#allocation10]] [#allocation15]
            %304 = sst [smem:[#allocation11]] [#allocation14]
          $region52: #{tpu_custom_call.1} parent=39 // pred_fallthru
            _
          %306 = shalt.err (0)
          %s308 = sshll.u32 %s300, 4
          %s309 = int_to_ptr.vmem [resolvable:$true] %s308
          %311 = dma.hbm_to_vmem [thread:$0]  %s298, 16, %s309, %s266
          %s312 = sadd.s32 %s260, 3
          %s313 = sld [smem:[#allocation5 + %s312]]
          %s314 = smul.addr %s313, 16
          %s315 = scalar_lea.hbm %s1, %s314
          %s316 = sadd.s32 3, %s264
          %s317 = scalar_lea.vmem [#allocation2], %s316
          // Predicated region
          $region53: #{tpu_custom_call.1} parent=39 // pred_check
            _
          $region54: #{tpu_custom_call.1} parent=39 // pred_check_branch
            %319 = sbr.rel target = $region56
          $region55: #{tpu_custom_call.1} parent=39 // pred_region
            %320 = sst [smem:[#allocation10]] [#allocation17]
            %321 = sst [smem:[#allocation11]] [#allocation16]
          $region56: #{tpu_custom_call.1} parent=39 // pred_fallthru
            _
          %323 = shalt.err (0)
          %s325 = sshll.u32 %s317, 4
          %s326 = int_to_ptr.vmem [resolvable:$true] %s325
          %328 = dma.hbm_to_vmem [thread:$0]  %s315, 16, %s326, %s266
          %s329 = sadd.s32 %s260, 4
          %s330 = sld [smem:[#allocation5 + %s329]]
          %s331 = smul.addr %s330, 16
          %s332 = scalar_lea.hbm %s1, %s331
          %s333 = sadd.s32 4, %s264
          %s334 = scalar_lea.vmem [#allocation2], %s333
          // Predicated region
          $region57: #{tpu_custom_call.1} parent=39 // pred_check
            _
          $region58: #{tpu_custom_call.1} parent=39 // pred_check_branch
            %336 = sbr.rel target = $region60
          $region59: #{tpu_custom_call.1} parent=39 // pred_region
            %337 = sst [smem:[#allocation10]] [#allocation19]
            %338 = sst [smem:[#allocation11]] [#allocation18]
          $region60: #{tpu_custom_call.1} parent=39 // pred_fallthru
            _
          %340 = shalt.err (0)
          %s342 = sshll.u32 %s334, 4
          %s343 = int_to_ptr.vmem [resolvable:$true] %s342
          %345 = dma.hbm_to_vmem [thread:$0]  %s332, 16, %s343, %s266
          %s346 = sadd.s32 %s260, 5
          %s347 = sld [smem:[#allocation5 + %s346]]
          %s348 = smul.addr %s347, 16
          %s349 = scalar_lea.hbm %s1, %s348
          %s350 = sadd.s32 5, %s264
          %s351 = scalar_lea.vmem [#allocation2], %s350
          // Predicated region
          $region61: #{tpu_custom_call.1} parent=39 // pred_check
            _
          $region62: #{tpu_custom_call.1} parent=39 // pred_check_branch
            %353 = sbr.rel target = $region64
          $region63: #{tpu_custom_call.1} parent=39 // pred_region
            %354 = sst [smem:[#allocation10]] [#allocation21]
            %355 = sst [smem:[#allocation11]] [#allocation20]
          $region64: #{tpu_custom_call.1} parent=39 // pred_fallthru
            _
          %357 = shalt.err (0)
          %s359 = sshll.u32 %s351, 4
          %s360 = int_to_ptr.vmem [resolvable:$true] %s359
          %362 = dma.hbm_to_vmem [thread:$0]  %s349, 16, %s360, %s266
          %s363 = sadd.s32 %s260, 6
          %s364 = sld [smem:[#allocation5 + %s363]]
          %s365 = smul.addr %s364, 16
          %s366 = scalar_lea.hbm %s1, %s365
          %s367 = sadd.s32 6, %s264
          %s368 = scalar_lea.vmem [#allocation2], %s367
          // Predicated region
          $region65: #{tpu_custom_call.1} parent=39 // pred_check
            _
          $region66: #{tpu_custom_call.1} parent=39 // pred_check_branch
            %370 = sbr.rel target = $region68
          $region67: #{tpu_custom_call.1} parent=39 // pred_region
            %371 = sst [smem:[#allocation10]] [#allocation23]
            %372 = sst [smem:[#allocation11]] [#allocation22]
          $region68: #{tpu_custom_call.1} parent=39 // pred_fallthru
            _
          %374 = shalt.err (0)
          %s376 = sshll.u32 %s368, 4
          %s377 = int_to_ptr.vmem [resolvable:$true] %s376
          %379 = dma.hbm_to_vmem [thread:$0]  %s366, 16, %s377, %s266
          %s380 = sadd.s32 %s260, 7
          %s381 = sld [smem:[#allocation5 + %s380]]
          %s382 = smul.addr %s381, 16
          %s383 = scalar_lea.hbm %s1, %s382
          %s384 = sadd.s32 7, %s264
          %s385 = scalar_lea.vmem [#allocation2], %s384
          // Predicated region
          $region69: #{tpu_custom_call.1} parent=39 // pred_check
            _
          $region70: #{tpu_custom_call.1} parent=39 // pred_check_branch
            %387 = sbr.rel target = $region72
          $region71: #{tpu_custom_call.1} parent=39 // pred_region
            %388 = sst [smem:[#allocation10]] [#allocation25]
            %389 = sst [smem:[#allocation11]] [#allocation24]
          $region72: #{tpu_custom_call.1} parent=39 // pred_fallthru
            _
          %391 = shalt.err (0)
          %s393 = sshll.u32 %s385, 4
          %s394 = int_to_ptr.vmem [resolvable:$true] %s393
          %396 = dma.hbm_to_vmem [thread:$0]  %s383, 16, %s394, %s266
        $region40: #{tpu_custom_call.1} parent=35 // pred_fallthru
          _
        %s397 = sadd.s32 %s241, 1
        %p398 = scmp.lt.s32.totalorder %s397, 2
        // Predicated region
        $region73: #{tpu_custom_call.1} parent=35 // pred_check
          %p399 = pneg %p398
        $region74: #{tpu_custom_call.1} parent=35 // pred_check_branch
          %401 = sbr.rel (%p399) target = $region76
        $region75: #{tpu_custom_call.1} parent=35 // pred_region
          %s402 = sadd.s32 %s31, 1
          %p403 = scmp.eq.s32.totalorder %s402, 2
          %s404 = sadd.s32 %s30, 1
          %s405 = scalar_select %p403, %s404, %s30
          %s406 = scalar_select %p403, 0, %s402
          %s407 = smul.u32 %s406, 8
          %s408 = smul.u32 %s405, 8
          %s409 = sadd.s32 %s407, %s408
          %s410 = ssub.s32 1, %s253
          %s411 = sld [smem:[#allocation5 + %s409]]
          %s412 = smul.addr %s411, 16
          %s413 = scalar_lea.hbm %s1, %s412
          %s414 = smul.u32 %s410, 8
          %s415 = scalar_lea.vmem [#allocation2], %s414
          %s416 = scalar_lea.sflag [#allocation3], %s410
          // Predicated region
          $region77: #{tpu_custom_call.1} parent=75 // pred_check
            _
          $region78: #{tpu_custom_call.1} parent=75 // pred_check_branch
            %418 = sbr.rel target = $region80
          $region79: #{tpu_custom_call.1} parent=75 // pred_region
            %419 = sst [smem:[#allocation10]] [#allocation27]
            %420 = sst [smem:[#allocation11]] [#allocation26]
          $region80: #{tpu_custom_call.1} parent=75 // pred_fallthru
            _
          %422 = shalt.err (0)
          %s424 = sshll.u32 %s415, 4
          %s425 = int_to_ptr.vmem [resolvable:$true] %s424
          %427 = dma.hbm_to_vmem [thread:$0]  %s413, 16, %s425, %s416
          %s428 = sadd.s32 %s409, 1
          %s429 = sld [smem:[#allocation5 + %s428]]
          %s430 = smul.addr %s429, 16
          %s431 = scalar_lea.hbm %s1, %s430
          %s432 = sadd.s32 1, %s414
          %s433 = scalar_lea.vmem [#allocation2], %s432
          // Predicated region
          $region81: #{tpu_custom_call.1} parent=75 // pred_check
            _
          $region82: #{tpu_custom_call.1} parent=75 // pred_check_branch
            %435 = sbr.rel target = $region84
          $region83: #{tpu_custom_call.1} parent=75 // pred_region
            %436 = sst [smem:[#allocation10]] [#allocation29]
            %437 = sst [smem:[#allocation11]] [#allocation28]
          $region84: #{tpu_custom_call.1} parent=75 // pred_fallthru
            _
          %439 = shalt.err (0)
          %s441 = sshll.u32 %s433, 4
          %s442 = int_to_ptr.vmem [resolvable:$true] %s441
          %444 = dma.hbm_to_vmem [thread:$0]  %s431, 16, %s442, %s416
          %s445 = sadd.s32 %s409, 2
          %s446 = sld [smem:[#allocation5 + %s445]]
          %s447 = smul.addr %s446, 16
          %s448 = scalar_lea.hbm %s1, %s447
          %s449 = sadd.s32 2, %s414
          %s450 = scalar_lea.vmem [#allocation2], %s449
          // Predicated region
          $region85: #{tpu_custom_call.1} parent=75 // pred_check
            _
          $region86: #{tpu_custom_call.1} parent=75 // pred_check_branch
            %452 = sbr.rel target = $region88
          $region87: #{tpu_custom_call.1} parent=75 // pred_region
            %453 = sst [smem:[#allocation10]] [#allocation31]
            %454 = sst [smem:[#allocation11]] [#allocation30]
          $region88: #{tpu_custom_call.1} parent=75 // pred_fallthru
            _
          %456 = shalt.err (0)
          %s458 = sshll.u32 %s450, 4
          %s459 = int_to_ptr.vmem [resolvable:$true] %s458
          %461 = dma.hbm_to_vmem [thread:$0]  %s448, 16, %s459, %s416
          %s462 = sadd.s32 %s409, 3
          %s463 = sld [smem:[#allocation5 + %s462]]
          %s464 = smul.addr %s463, 16
          %s465 = scalar_lea.hbm %s1, %s464
          %s466 = sadd.s32 3, %s414
          %s467 = scalar_lea.vmem [#allocation2], %s466
          // Predicated region
          $region89: #{tpu_custom_call.1} parent=75 // pred_check
            _
          $region90: #{tpu_custom_call.1} parent=75 // pred_check_branch
            %469 = sbr.rel target = $region92
          $region91: #{tpu_custom_call.1} parent=75 // pred_region
            %470 = sst [smem:[#allocation10]] [#allocation33]
            %471 = sst [smem:[#allocation11]] [#allocation32]
          $region92: #{tpu_custom_call.1} parent=75 // pred_fallthru
            _
          %473 = shalt.err (0)
          %s475 = sshll.u32 %s467, 4
          %s476 = int_to_ptr.vmem [resolvable:$true] %s475
          %478 = dma.hbm_to_vmem [thread:$0]  %s465, 16, %s476, %s416
          %s479 = sadd.s32 %s409, 4
          %s480 = sld [smem:[#allocation5 + %s479]]
          %s481 = smul.addr %s480, 16
          %s482 = scalar_lea.hbm %s1, %s481
          %s483 = sadd.s32 4, %s414
          %s484 = scalar_lea.vmem [#allocation2], %s483
          // Predicated region
          $region93: #{tpu_custom_call.1} parent=75 // pred_check
            _
          $region94: #{tpu_custom_call.1} parent=75 // pred_check_branch
            %486 = sbr.rel target = $region96
          $region95: #{tpu_custom_call.1} parent=75 // pred_region
            %487 = sst [smem:[#allocation10]] [#allocation35]
            %488 = sst [smem:[#allocation11]] [#allocation34]
          $region96: #{tpu_custom_call.1} parent=75 // pred_fallthru
            _
          %490 = shalt.err (0)
          %s492 = sshll.u32 %s484, 4
          %s493 = int_to_ptr.vmem [resolvable:$true] %s492
          %495 = dma.hbm_to_vmem [thread:$0]  %s482, 16, %s493, %s416
          %s496 = sadd.s32 %s409, 5
          %s497 = sld [smem:[#allocation5 + %s496]]
          %s498 = smul.addr %s497, 16
          %s499 = scalar_lea.hbm %s1, %s498
          %s500 = sadd.s32 5, %s414
          %s501 = scalar_lea.vmem [#allocation2], %s500
          // Predicated region
          $region97: #{tpu_custom_call.1} parent=75 // pred_check
            _
          $region98: #{tpu_custom_call.1} parent=75 // pred_check_branch
            %503 = sbr.rel target = $region100
          $region99: #{tpu_custom_call.1} parent=75 // pred_region
            %504 = sst [smem:[#allocation10]] [#allocation37]
            %505 = sst [smem:[#allocation11]] [#allocation36]
          $region100: #{tpu_custom_call.1} parent=75 // pred_fallthru
            _
          %507 = shalt.err (0)
          %s509 = sshll.u32 %s501, 4
          %s510 = int_to_ptr.vmem [resolvable:$true] %s509
          %512 = dma.hbm_to_vmem [thread:$0]  %s499, 16, %s510, %s416
          %s513 = sadd.s32 %s409, 6
          %s514 = sld [smem:[#allocation5 + %s513]]
          %s515 = smul.addr %s514, 16
          %s516 = scalar_lea.hbm %s1, %s515
          %s517 = sadd.s32 6, %s414
          %s518 = scalar_lea.vmem [#allocation2], %s517
          // Predicated region
          $region101: #{tpu_custom_call.1} parent=75 // pred_check
            _
          $region102: #{tpu_custom_call.1} parent=75 // pred_check_branch
            %520 = sbr.rel target = $region104
          $region103: #{tpu_custom_call.1} parent=75 // pred_region
            %521 = sst [smem:[#allocation10]] [#allocation39]
            %522 = sst [smem:[#allocation11]] [#allocation38]
          $region104: #{tpu_custom_call.1} parent=75 // pred_fallthru
            _
          %524 = shalt.err (0)
          %s526 = sshll.u32 %s518, 4
          %s527 = int_to_ptr.vmem [resolvable:$true] %s526
          %529 = dma.hbm_to_vmem [thread:$0]  %s516, 16, %s527, %s416
          %s530 = sadd.s32 %s409, 7
          %s531 = sld [smem:[#allocation5 + %s530]]
          %s532 = smul.addr %s531, 16
          %s533 = scalar_lea.hbm %s1, %s532
          %s534 = sadd.s32 7, %s414
          %s535 = scalar_lea.vmem [#allocation2], %s534
          // Predicated region
          $region105: #{tpu_custom_call.1} parent=75 // pred_check
            _
          $region106: #{tpu_custom_call.1} parent=75 // pred_check_branch
            %537 = sbr.rel target = $region108
          $region107: #{tpu_custom_call.1} parent=75 // pred_region
            %538 = sst [smem:[#allocation10]] [#allocation41]
            %539 = sst [smem:[#allocation11]] [#allocation40]
          $region108: #{tpu_custom_call.1} parent=75 // pred_fallthru
            _
          %541 = shalt.err (0)
          %s543 = sshll.u32 %s535, 4
          %s544 = int_to_ptr.vmem [resolvable:$true] %s543
          %546 = dma.hbm_to_vmem [thread:$0]  %s533, 16, %s544, %s416
        $region76: #{tpu_custom_call.1} parent=35 // pred_fallthru
          _
        %s547 = smul.u32 %s253, 8
        %s548 = scalar_lea.vmem [#allocation2], %s547
        %s549 = scalar_lea.sflag [#allocation3], %s253
        %s550 = smul.u32 8, 1
        %s551 = sshll.u32 %s550, 4
        %552 = dma.done %s549, %s551
        %v553 = vld [vmem:[%s548] sm:$0xff]
        %v554 = vld [vmem:[%s238] sm:$0xff]
        %v555 = vld [vmem:[%s233] sm:$0xff]
        %v556 = vld [vmem:[%s4] sm:$0x3]
        %v557 = vcvt.s32.f32 %v555
        %v559 = vrot.slane %v556, 7
        %v561 = vsub.f32 %v556, %v559
        %563 = vset.pattern.permute.xlu0 0
        %564 = vperm.xlu0 %563, %v557
        %v565 = vpop.permute.xlu0 %564
        %v567 = vlaneseq
        %v568 = vshrl.u32 %v567, 7
        %v569 = vsub.s32 1, %v568
        %v570 = vrot.slane %v561, %v569
        %v571 = vmul.f32 %v565, %v570
        %v572 = vlaneseq
        %v573 = vshrl.u32 %v572, 7
        %v574 = vsub.s32 0, %v573
        %v575 = vrot.slane %v556, %v574
        %v576 = vadd.f32 %v575, %v571
        %v577 = vadd.f32 %v553, %v554
        %v578 = vadd.f32 %v577, %v576
        %579 = vadd.xlane.f32.xlu0 %v578
        %v580 = vpop.xlane.xlu0 %579
        %v581 = vrcp.pop 128.0
        %v582 = vmul.f32 %v580, %v581
        %v583 = vsub.f32 %v578, %v582
        %v584 = vmul.f32 %v583, %v583
        %585 = vadd.xlane.f32.xlu0 %v584
        %v586 = vpop.xlane.xlu0 %585
        %v587 = vmul.f32 %v586, %v581
        %v588 = vadd.f32 %v587, 1e-12
        %v589 = vrsqrt.pop %v588
        %v590 = vmul.f32 %v583, %v589
        %v591 = vld [vmem:[%s5] sm:$0x1]
        %v592 = vld [vmem:[%s5 + $0x1] sm:$0x1]
        %v593 = vlaneseq
        %v594 = vshrl.u32 %v593, 7
        %v595 = vsub.s32 0, %v594
        %v596 = vrot.slane %v591, %v595
        %v597 = vmul.f32 %v590, %v596
        %v598 = vlaneseq
        %v599 = vshrl.u32 %v598, 7
        %v600 = vsub.s32 0, %v599
        %v601 = vrot.slane %v592, %v600
        %v602 = vadd.f32 %v597, %v601
        %603 = vst [vmem:[%s228] sm:$0xff] %v602
        %s604 = sand.u32 %s144, 1
        %s605 = scalar_lea.sflag [#allocation7], %s604
        %s606 = sand.u32 %s144, 1
        %s607 = smul.addr %s606, 8
        %s608 = scalar_lea.vmem [#allocation6], %s607
        // Predicated region
        $region109: #{tpu_custom_call.1} parent=35 // pred_check
          %p609 = pneg %p154
        $region110: #{tpu_custom_call.1} parent=35 // pred_check_branch
          %611 = sbr.rel (%p609) target = $region112
        $region111: #{tpu_custom_call.1} parent=35 // pred_region
          %s612 = sadd.s32 %s31, %s30
          %s614 = ssub.s32 128, 128
          %615 = vsyncadd %s605, %s614
          %s616 = smul.addr %s612, 128
          %s617 = scalar_lea.hbm %s6, %s616
          %s619 = sshll.u32 %s608, 4
          %s620 = int_to_ptr.vmem [resolvable:$true] %s619
          %622 = dma.vmem_to_hbm [thread:$0]  %s620, 128, %s617, %s605
        $region112: #{tpu_custom_call.1} parent=35 // pred_fallthru
          _
      $region36: #{tpu_custom_call.1} parent=5 // pred_fallthru
        _
      %p623 = scmp.le.s32.totalorder 2, %s21
      // Predicated region
      $region113: #{tpu_custom_call.1} parent=5 // pred_check
        %p624 = pneg %p623
      $region114: #{tpu_custom_call.1} parent=5 // pred_check_branch
        %626 = sbr.rel (%p624) target = $region116
      $region115: #{tpu_custom_call.1} parent=5 // pred_region
        %s627 = ssub.s32 %s21, 2
        // Predicated region
        $region117: #{tpu_custom_call.1} parent=115 // pred_check
          %p628 = pneg %p160
        $region118: #{tpu_custom_call.1} parent=115 // pred_check_branch
          %630 = sbr.rel (%p628) target = $region120
        $region119: #{tpu_custom_call.1} parent=115 // pred_region
          %s631 = sand.u32 %s145, 1
          %s632 = scalar_lea.sflag [#allocation7], %s631
          %s633 = sand.u32 %s145, 1
          %s634 = smul.addr %s633, 8
          %s635 = scalar_lea.vmem [#allocation6], %s634
          %636 = dma.done %s632, 128
        $region120: #{tpu_custom_call.1} parent=115 // pred_fallthru
          _
      $region116: #{tpu_custom_call.1} parent=5 // pred_fallthru
        _
    $region6: #{tpu_custom_call.1} parent=1 // loop_footer
      %s25 = sadd.s32 1, %s21
    $region7: #{tpu_custom_call.1} parent=1 // loop_footer_branch
      %20 = sbr.rel target = $region3
    $region8: #{tpu_custom_call.1} parent=1 // loop_exit
      _
    %637 = vsyncpa [#allocation7], 1
    %s638 = scalar_lea.sflag [#allocation7], 1
    %639 = vsyncpa %s638, 1
  %640 = vsyncmov [#allocation3]
  %s641 = vpop.sfrf %640
  %p642 = scmp.eq.s32.totalorder %s641, 0
  %p643 = pneg %p642
  %645 = shalt.err (%p643)
  %s646 = scalar_lea.sflag [#allocation3], 1
  %647 = vsyncmov %s646
  %s648 = vpop.sfrf %647
  %p649 = scmp.eq.s32.totalorder %s648, 0
  %p650 = pneg %p649
  %652 = shalt.err (%p650)

</llo_original>
